<compile_context>
chip_gen: v7x
topology: tpu7x:2x2x1
jax: 0.10.0
libtpu: 0.0.40
codegen_flags: <defaults>
</compile_context>

<pallas_src>
import functools

import jax
import jax.numpy as jnp
from jax.experimental import pallas as pl
from jax.experimental.pallas import tpu as pltpu


# ----------------------------------------------------------------------------
# Fused dynamic-conv kernel: one batch element per grid step.
# ----------------------------------------------------------------------------
def _dyconv_kernel(attn_ref, x_ref, w_ref, b_ref, o_ref, *,
                   num_k, taps, dilation, seq_len):
    """attn_ref: SMEM (B, K)            f32  per-sample attention over K kernels
       x_ref   : VMEM (1, Lp, Cin)      bf16 padded channels-last input
       w_ref   : VMEM (K*k, Cin, Cout)  f32  candidate kernels (tap-major per K)
       b_ref   : VMEM (K, 1, Cout)      f32  candidate biases
       o_ref   : VMEM (1, L, Cout)      f32  channels-last output
    """
    bidx = pl.program_id(0)
    cout = o_ref.shape[-1]

    # Per-sample attention scalars (SMEM scalar reads, broadcast on use).
    a = [attn_ref[bidx, kk] for kk in range(num_k)]

    # Aggregate biases in f32 (VPU).
    bias = a[0] * b_ref[0]                                   # (1, Cout)
    for kk in range(1, num_k):
        bias = bias + a[kk] * b_ref[kk]

    # Dilated conv = `taps` shifted MXU matmuls with in-kernel weight
    # aggregation; bf16 operands, f32 accumulation.
    acc = jnp.zeros((seq_len, cout), jnp.float32)
    for t in range(taps):
        w_t = a[0] * w_ref[t]                                # (Cin, Cout) f32
        for kk in range(1, num_k):
            w_t = w_t + a[kk] * w_ref[kk * taps + t]
        x_t = x_ref[0, pl.ds(t * dilation, seq_len), :]      # (L, Cin) bf16
        acc = acc + jnp.dot(x_t, w_t.astype(jnp.bfloat16),
                            preferred_element_type=jnp.float32)
    o_ref[0] = acc + bias


def _dyconv_pallas(attn, x_nlc, w_flat, bias, *, num_k, taps, dilation, seq_len):
    B, Lp, Cin = x_nlc.shape
    Cout = w_flat.shape[-1]
    kern = functools.partial(_dyconv_kernel, num_k=num_k, taps=taps,
                             dilation=dilation, seq_len=seq_len)
    return pl.pallas_call(
        kern,
        out_shape=jax.ShapeDtypeStruct((B, seq_len, Cout), jnp.float32),
        grid=(B,),
        in_specs=[
            pl.BlockSpec(memory_space=pltpu.MemorySpace.SMEM),             # attention scalars
            pl.BlockSpec((1, Lp, Cin), lambda i: (i, 0, 0)),               # input slab
            pl.BlockSpec((num_k * taps, Cin, Cout), lambda i: (0, 0, 0)),  # K kernels (resident)
            pl.BlockSpec((num_k, 1, Cout), lambda i: (0, 0, 0)),           # K biases
        ],
        out_specs=pl.BlockSpec((1, seq_len, Cout), lambda i: (i, 0, 0)),
        compiler_params=pltpu.CompilerParams(
            dimension_semantics=("parallel",),
            vmem_limit_bytes=48 * 1024 * 1024,
        ),
    )(attn, x_nlc, w_flat, bias)


# ----------------------------------------------------------------------------
# Encoder forward (matches Encoder.forward(input, test) -> DYConv1d(input))
# ----------------------------------------------------------------------------
def encoder_forward(params, x, *, dilation=1, test=True):
    """x: (B, Cin, L) NCL float32 -> (B, Cout, L) float32."""
    del test  # Encoder.forward has no training-dependent branch
    B, Cin, L = x.shape
    K, taps, _, Cout = params["w"].shape

    # Attention over the K candidate kernels (tiny, lane-sparse -> XLA).
    pooled = jnp.mean(x, axis=-1)                                        # (B, Cin)
    h = jax.nn.relu(pooled @ params["att_w1"].T + params["att_b1"])      # (B, H)
    attn = jax.nn.softmax(h @ params["att_w2"].T + params["att_b2"], -1)
    attn = attn.astype(jnp.float32)                                      # (B, K)

    # 'same' padding, channels-last, bf16 at the MXU boundary.
    rf = dilation * (taps - 1)
    pad_l = rf // 2
    pad_r = rf - pad_l
    x_nlc = jnp.pad(x, ((0, 0), (0, 0), (pad_l, pad_r)))
    x_nlc = x_nlc.transpose(0, 2, 1).astype(jnp.bfloat16)                # (B, Lp, Cin)

    w_flat = params["w"].reshape(K * taps, Cin, Cout)                    # tap-major per K
    out_nlc = _dyconv_pallas(attn, x_nlc, w_flat, params["b"],
                             num_k=K, taps=taps, dilation=dilation, seq_len=L)
    return out_nlc.transpose(0, 2, 1)                                    # (B, Cout, L)


# Pure-JAX reference (f32 everywhere) for correctness verification.
def encoder_reference(params, x, *, dilation=1):
    B, Cin, L = x.shape
    K, taps, _, Cout = params["w"].shape
    pooled = jnp.mean(x, axis=-1)
    h = jax.nn.relu(pooled @ params["att_w1"].T + params["att_b1"])
    attn = jax.nn.softmax(h @ params["att_w2"].T + params["att_b2"], -1)
    w_agg = jnp.einsum("bk,ktco->btco", attn, params["w"])               # (B, k, Cin, Cout)
    b_agg = attn @ params["b"][:, 0, :]                                  # (B, Cout)
    rf = dilation * (taps - 1)
    pad_l = rf // 2
    pad_r = rf - pad_l
    xp = jnp.pad(x, ((0, 0), (0, 0), (pad_l, pad_r)))
    shifted = jnp.stack([xp[:, :, t * dilation:t * dilation + L]
                         for t in range(taps)], axis=-1)                 # (B, Cin, L, k)
    out = jnp.einsum("bclt,btco->bol", shifted, w_agg) + b_agg[:, :, None]
    return out


# ----------------------------------------------------------------------------
# Deterministic synthetic parameters
# ----------------------------------------------------------------------------
def build_params(key, *, in_planes, out_planes, kernel_size, K, attn_hidden):
    ks = jax.random.split(key, 4)
    s = 0.1
    return dict(
        # candidate kernels stored tap-major: (K, k, Cin, Cout)
        w=(s * jax.random.normal(ks[0], (K, kernel_size, in_planes, out_planes))
           ).astype(jnp.float32),
        b=(s * jax.random.normal(ks[1], (K, 1, out_planes))).astype(jnp.float32),
        att_w1=(s * jax.random.normal(ks[2], (attn_hidden, in_planes))).astype(jnp.float32),
        att_b1=jnp.zeros((attn_hidden,), jnp.float32),
        att_w2=(s * jax.random.normal(ks[3], (K, attn_hidden))).astype(jnp.float32),
        att_b2=jnp.zeros((K,), jnp.float32),
    )


# ----------------------------------------------------------------------------
# Main
# ----------------------------------------------------------------------------
if __name__ == "__main__":
    cfg = dict(
        B=2, L=16,
        DY_CNN_in_planes=32,
        DY_CNN_out_planes=128,      # 128 -> lane-dense output stores
        DY_CNN_kernel_size=3,
        DY_CNN_dilation=1,
        DY_CNN_K=4,
        attn_hidden=8,
    )

    root = jax.random.PRNGKey(0)
    kp, kx = jax.random.split(root)
    params = build_params(kp,
                          in_planes=cfg["DY_CNN_in_planes"],
                          out_planes=cfg["DY_CNN_out_planes"],
                          kernel_size=cfg["DY_CNN_kernel_size"],
                          K=cfg["DY_CNN_K"],
                          attn_hidden=cfg["attn_hidden"])
    x = jax.random.normal(kx, (cfg["B"], cfg["DY_CNN_in_planes"], cfg["L"]),
                          jnp.float32)

    forward = jax.jit(functools.partial(encoder_forward,
                                        dilation=cfg["DY_CNN_dilation"]))
    out = forward(params, x)
    jax.block_until_ready(out)
    assert out.shape == (cfg["B"], cfg["DY_CNN_out_planes"], cfg["L"])

    ref = encoder_reference(params, x, dilation=cfg["DY_CNN_dilation"])
    err = float(jnp.max(jnp.abs(out - ref)))
    assert err < 5e-2, f"max abs error vs reference: {err}"

    print("KERNEL_OK")
</pallas_src>

<mosaic_0001>
module attributes {stable_mosaic.version = 11 : i64} {
  func.func @_dyconv_kernel(%arg0: i32, %arg1: memref<2x4xf32, #tpu.memory_space<smem>>, %arg2: memref<1x18x32xbf16, #tpu.memory_space<vmem>>, %arg3: memref<12x32x128xf32, #tpu.memory_space<vmem>>, %arg4: memref<4x1x128xf32, #tpu.memory_space<vmem>>, %arg5: memref<1x16x128xf32, #tpu.memory_space<vmem>>) attributes {dimension_semantics = [#tpu.dimension_semantics<parallel>], iteration_bounds = array<i64: 2>, scalar_prefetch = 0 : i64, scratch_operands = 0 : i64, tpu.core_type = #tpu.core_type<tc>, window_params = [{transform_indices = @transform_0, window_bounds = array<i64: 2, 4>}, {transform_indices = @transform_1, window_bounds = array<i64: 1, 18, 32>}, {pipeline_mode = #tpu.pipeline_mode<synchronous>, transform_indices = @transform_2, window_bounds = array<i64: 12, 32, 128>}, {pipeline_mode = #tpu.pipeline_mode<synchronous>, transform_indices = @transform_3, window_bounds = array<i64: 4, 1, 128>}, {transform_indices = @transform_4, window_bounds = array<i64: 1, 16, 128>}]} {
    %0 = arith.index_cast %arg0 : i32 to index
    %c0 = arith.constant 0 : index
    %1 = memref.load %arg1[%0, %c0] : memref<2x4xf32, #tpu.memory_space<smem>>
    %2 = arith.index_cast %arg0 : i32 to index
    %c1 = arith.constant 1 : index
    %3 = memref.load %arg1[%2, %c1] : memref<2x4xf32, #tpu.memory_space<smem>>
    %4 = arith.index_cast %arg0 : i32 to index
    %c2 = arith.constant 2 : index
    %5 = memref.load %arg1[%4, %c2] : memref<2x4xf32, #tpu.memory_space<smem>>
    %6 = arith.index_cast %arg0 : i32 to index
    %c3 = arith.constant 3 : index
    %7 = memref.load %arg1[%6, %c3] : memref<2x4xf32, #tpu.memory_space<smem>>
    %c0_0 = arith.constant 0 : index
    %c0_1 = arith.constant 0 : index
    %c0_2 = arith.constant 0 : index
    %8 = vector.load %arg4[%c0_0, %c0_1, %c0_2] : memref<4x1x128xf32, #tpu.memory_space<vmem>>, vector<1x1x128xf32>
    %9 = vector.shape_cast %8 : vector<1x1x128xf32> to vector<1x128xf32>
    %10 = vector.broadcast %1 : f32 to vector<1x128xf32>
    %11 = arith.mulf %10, %9 : vector<1x128xf32>
    %c1_3 = arith.constant 1 : index
    %c0_4 = arith.constant 0 : index
    %c0_5 = arith.constant 0 : index
    %12 = vector.load %arg4[%c1_3, %c0_4, %c0_5] : memref<4x1x128xf32, #tpu.memory_space<vmem>>, vector<1x1x128xf32>
    %13 = vector.shape_cast %12 : vector<1x1x128xf32> to vector<1x128xf32>
    %14 = vector.broadcast %3 : f32 to vector<1x128xf32>
    %15 = arith.mulf %14, %13 : vector<1x128xf32>
    %16 = arith.addf %11, %15 : vector<1x128xf32>
    %c2_6 = arith.constant 2 : index
    %c0_7 = arith.constant 0 : index
    %c0_8 = arith.constant 0 : index
    %17 = vector.load %arg4[%c2_6, %c0_7, %c0_8] : memref<4x1x128xf32, #tpu.memory_space<vmem>>, vector<1x1x128xf32>
    %18 = vector.shape_cast %17 : vector<1x1x128xf32> to vector<1x128xf32>
    %19 = vector.broadcast %5 : f32 to vector<1x128xf32>
    %20 = arith.mulf %19, %18 : vector<1x128xf32>
    %21 = arith.addf %16, %20 : vector<1x128xf32>
    %c3_9 = arith.constant 3 : index
    %c0_10 = arith.constant 0 : index
    %c0_11 = arith.constant 0 : index
    %22 = vector.load %arg4[%c3_9, %c0_10, %c0_11] : memref<4x1x128xf32, #tpu.memory_space<vmem>>, vector<1x1x128xf32>
    %23 = vector.shape_cast %22 : vector<1x1x128xf32> to vector<1x128xf32>
    %24 = vector.broadcast %7 : f32 to vector<1x128xf32>
    %25 = arith.mulf %24, %23 : vector<1x128xf32>
    %26 = arith.addf %21, %25 : vector<1x128xf32>
    %cst = arith.constant 0.000000e+00 : f32
    %27 = vector.broadcast %cst : f32 to vector<16x128xf32>
    %c0_12 = arith.constant 0 : index
    %c0_13 = arith.constant 0 : index
    %c0_14 = arith.constant 0 : index
    %28 = vector.load %arg3[%c0_12, %c0_13, %c0_14] : memref<12x32x128xf32, #tpu.memory_space<vmem>>, vector<1x32x128xf32>
    %29 = vector.shape_cast %28 : vector<1x32x128xf32> to vector<32x128xf32>
    %30 = vector.broadcast %1 : f32 to vector<32x128xf32>
    %31 = arith.mulf %30, %29 : vector<32x128xf32>
    %c3_15 = arith.constant 3 : index
    %c0_16 = arith.constant 0 : index
    %c0_17 = arith.constant 0 : index
    %32 = vector.load %arg3[%c3_15, %c0_16, %c0_17] : memref<12x32x128xf32, #tpu.memory_space<vmem>>, vector<1x32x128xf32>
    %33 = vector.shape_cast %32 : vector<1x32x128xf32> to vector<32x128xf32>
    %34 = vector.broadcast %3 : f32 to vector<32x128xf32>
    %35 = arith.mulf %34, %33 : vector<32x128xf32>
    %36 = arith.addf %31, %35 : vector<32x128xf32>
    %c6 = arith.constant 6 : index
    %c0_18 = arith.constant 0 : index
    %c0_19 = arith.constant 0 : index
    %37 = vector.load %arg3[%c6, %c0_18, %c0_19] : memref<12x32x128xf32, #tpu.memory_space<vmem>>, vector<1x32x128xf32>
    %38 = vector.shape_cast %37 : vector<1x32x128xf32> to vector<32x128xf32>
    %39 = vector.broadcast %5 : f32 to vector<32x128xf32>
    %40 = arith.mulf %39, %38 : vector<32x128xf32>
    %41 = arith.addf %36, %40 : vector<32x128xf32>
    %c9 = arith.constant 9 : index
    %c0_20 = arith.constant 0 : index
    %c0_21 = arith.constant 0 : index
    %42 = vector.load %arg3[%c9, %c0_20, %c0_21] : memref<12x32x128xf32, #tpu.memory_space<vmem>>, vector<1x32x128xf32>
    %43 = vector.shape_cast %42 : vector<1x32x128xf32> to vector<32x128xf32>
    %44 = vector.broadcast %7 : f32 to vector<32x128xf32>
    %45 = arith.mulf %44, %43 : vector<32x128xf32>
    %46 = arith.addf %41, %45 : vector<32x128xf32>
    %c0_22 = arith.constant 0 : index
    %c0_23 = arith.constant 0 : index
    %c0_24 = arith.constant 0 : index
    %47 = vector.load %arg2[%c0_22, %c0_23, %c0_24] : memref<1x18x32xbf16, #tpu.memory_space<vmem>>, vector<1x16x32xbf16>
    %48 = vector.shape_cast %47 : vector<1x16x32xbf16> to vector<16x32xbf16>
    %49 = arith.truncf %46 : vector<32x128xf32> to vector<32x128xbf16>
    %cst_25 = arith.constant dense<0.000000e+00> : vector<16x128xf32>
    %50 = tpu.matmul %48, %49, %cst_25 {dimension_numbers = #tpu.dot_dimension_numbers<[1], [0], [0], [1], [0, 0, 1, 1], [], []>} : vector<16x32xbf16>, vector<32x128xbf16>, vector<16x128xf32> -> vector<16x128xf32>
    %51 = arith.addf %27, %50 : vector<16x128xf32>
    %c1_26 = arith.constant 1 : index
    %c0_27 = arith.constant 0 : index
    %c0_28 = arith.constant 0 : index
    %52 = vector.load %arg3[%c1_26, %c0_27, %c0_28] : memref<12x32x128xf32, #tpu.memory_space<vmem>>, vector<1x32x128xf32>
    %53 = vector.shape_cast %52 : vector<1x32x128xf32> to vector<32x128xf32>
    %54 = vector.broadcast %1 : f32 to vector<32x128xf32>
    %55 = arith.mulf %54, %53 : vector<32x128xf32>
    %c4 = arith.constant 4 : index
    %c0_29 = arith.constant 0 : index
    %c0_30 = arith.constant 0 : index
    %56 = vector.load %arg3[%c4, %c0_29, %c0_30] : memref<12x32x128xf32, #tpu.memory_space<vmem>>, vector<1x32x128xf32>
    %57 = vector.shape_cast %56 : vector<1x32x128xf32> to vector<32x128xf32>
    %58 = vector.broadcast %3 : f32 to vector<32x128xf32>
    %59 = arith.mulf %58, %57 : vector<32x128xf32>
    %60 = arith.addf %55, %59 : vector<32x128xf32>
    %c7 = arith.constant 7 : index
    %c0_31 = arith.constant 0 : index
    %c0_32 = arith.constant 0 : index
    %61 = vector.load %arg3[%c7, %c0_31, %c0_32] : memref<12x32x128xf32, #tpu.memory_space<vmem>>, vector<1x32x128xf32>
    %62 = vector.shape_cast %61 : vector<1x32x128xf32> to vector<32x128xf32>
    %63 = vector.broadcast %5 : f32 to vector<32x128xf32>
    %64 = arith.mulf %63, %62 : vector<32x128xf32>
    %65 = arith.addf %60, %64 : vector<32x128xf32>
    %c10 = arith.constant 10 : index
    %c0_33 = arith.constant 0 : index
    %c0_34 = arith.constant 0 : index
    %66 = vector.load %arg3[%c10, %c0_33, %c0_34] : memref<12x32x128xf32, #tpu.memory_space<vmem>>, vector<1x32x128xf32>
    %67 = vector.shape_cast %66 : vector<1x32x128xf32> to vector<32x128xf32>
    %68 = vector.broadcast %7 : f32 to vector<32x128xf32>
    %69 = arith.mulf %68, %67 : vector<32x128xf32>
    %70 = arith.addf %65, %69 : vector<32x128xf32>
    %c0_35 = arith.constant 0 : index
    %c1_36 = arith.constant 1 : index
    %c0_37 = arith.constant 0 : index
    %71 = vector.load %arg2[%c0_35, %c1_36, %c0_37] : memref<1x18x32xbf16, #tpu.memory_space<vmem>>, vector<1x16x32xbf16>
    %72 = vector.shape_cast %71 : vector<1x16x32xbf16> to vector<16x32xbf16>
    %73 = arith.truncf %70 : vector<32x128xf32> to vector<32x128xbf16>
    %cst_38 = arith.constant dense<0.000000e+00> : vector<16x128xf32>
    %74 = tpu.matmul %72, %73, %cst_38 {dimension_numbers = #tpu.dot_dimension_numbers<[1], [0], [0], [1], [0, 0, 1, 1], [], []>} : vector<16x32xbf16>, vector<32x128xbf16>, vector<16x128xf32> -> vector<16x128xf32>
    %75 = arith.addf %51, %74 : vector<16x128xf32>
    %c2_39 = arith.constant 2 : index
    %c0_40 = arith.constant 0 : index
    %c0_41 = arith.constant 0 : index
    %76 = vector.load %arg3[%c2_39, %c0_40, %c0_41] : memref<12x32x128xf32, #tpu.memory_space<vmem>>, vector<1x32x128xf32>
    %77 = vector.shape_cast %76 : vector<1x32x128xf32> to vector<32x128xf32>
    %78 = vector.broadcast %1 : f32 to vector<32x128xf32>
    %79 = arith.mulf %78, %77 : vector<32x128xf32>
    %c5 = arith.constant 5 : index
    %c0_42 = arith.constant 0 : index
    %c0_43 = arith.constant 0 : index
    %80 = vector.load %arg3[%c5, %c0_42, %c0_43] : memref<12x32x128xf32, #tpu.memory_space<vmem>>, vector<1x32x128xf32>
    %81 = vector.shape_cast %80 : vector<1x32x128xf32> to vector<32x128xf32>
    %82 = vector.broadcast %3 : f32 to vector<32x128xf32>
    %83 = arith.mulf %82, %81 : vector<32x128xf32>
    %84 = arith.addf %79, %83 : vector<32x128xf32>
    %c8 = arith.constant 8 : index
    %c0_44 = arith.constant 0 : index
    %c0_45 = arith.constant 0 : index
    %85 = vector.load %arg3[%c8, %c0_44, %c0_45] : memref<12x32x128xf32, #tpu.memory_space<vmem>>, vector<1x32x128xf32>
    %86 = vector.shape_cast %85 : vector<1x32x128xf32> to vector<32x128xf32>
    %87 = vector.broadcast %5 : f32 to vector<32x128xf32>
    %88 = arith.mulf %87, %86 : vector<32x128xf32>
    %89 = arith.addf %84, %88 : vector<32x128xf32>
    %c11 = arith.constant 11 : index
    %c0_46 = arith.constant 0 : index
    %c0_47 = arith.constant 0 : index
    %90 = vector.load %arg3[%c11, %c0_46, %c0_47] : memref<12x32x128xf32, #tpu.memory_space<vmem>>, vector<1x32x128xf32>
    %91 = vector.shape_cast %90 : vector<1x32x128xf32> to vector<32x128xf32>
    %92 = vector.broadcast %7 : f32 to vector<32x128xf32>
    %93 = arith.mulf %92, %91 : vector<32x128xf32>
    %94 = arith.addf %89, %93 : vector<32x128xf32>
    %c0_48 = arith.constant 0 : index
    %c2_49 = arith.constant 2 : index
    %c0_50 = arith.constant 0 : index
    %95 = vector.load %arg2[%c0_48, %c2_49, %c0_50] : memref<1x18x32xbf16, #tpu.memory_space<vmem>>, vector<1x16x32xbf16>
    %96 = vector.shape_cast %95 : vector<1x16x32xbf16> to vector<16x32xbf16>
    %97 = arith.truncf %94 : vector<32x128xf32> to vector<32x128xbf16>
    %cst_51 = arith.constant dense<0.000000e+00> : vector<16x128xf32>
    %98 = tpu.matmul %96, %97, %cst_51 {dimension_numbers = #tpu.dot_dimension_numbers<[1], [0], [0], [1], [0, 0, 1, 1], [], []>} : vector<16x32xbf16>, vector<32x128xbf16>, vector<16x128xf32> -> vector<16x128xf32>
    %99 = arith.addf %75, %98 : vector<16x128xf32>
    %100 = vector.broadcast %26 : vector<1x128xf32> to vector<16x128xf32>
    %101 = arith.addf %99, %100 : vector<16x128xf32>
    %c0_52 = arith.constant 0 : index
    %c0_53 = arith.constant 0 : index
    %c0_54 = arith.constant 0 : index
    %102 = vector.load %arg5[%c0_52, %c0_53, %c0_54] : memref<1x16x128xf32, #tpu.memory_space<vmem>>, vector<1x16x128xf32>
    %103 = vector.shape_cast %102 : vector<1x16x128xf32> to vector<16x128xf32>
    %104 = vector.shape_cast %101 : vector<16x128xf32> to vector<1x16x128xf32>
    tpu.vector_store %arg5[%c0_52, %c0_53, %c0_54], %104 {strides = array<i32>} : memref<1x16x128xf32, #tpu.memory_space<vmem>>, vector<1x16x128xf32>,
    return
  }
  func.func @transform_0(%arg0: i32) -> (i32, i32) {
    %c0_i32 = arith.constant 0 : i32
    %c0_i32_0 = arith.constant 0 : i32
    %c0_i32_1 = arith.constant 0 : i32
    return %c0_i32, %c0_i32_0 : i32, i32
  }
  func.func @transform_1(%arg0: i32) -> (i32, i32, i32) {
    %c0_i32 = arith.constant 0 : i32
    %c0_i32_0 = arith.constant 0 : i32
    %c0_i32_1 = arith.constant 0 : i32
    return %arg0, %c0_i32, %c0_i32_0 : i32, i32, i32
  }
  func.func @transform_2(%arg0: i32) -> (i32, i32, i32) {
    %c0_i32 = arith.constant 0 : i32
    %c0_i32_0 = arith.constant 0 : i32
    %c0_i32_1 = arith.constant 0 : i32
    %c0_i32_2 = arith.constant 0 : i32
    return %c0_i32, %c0_i32_0, %c0_i32_1 : i32, i32, i32
  }
  func.func @transform_3(%arg0: i32) -> (i32, i32, i32) {
    %c0_i32 = arith.constant 0 : i32
    %c0_i32_0 = arith.constant 0 : i32
    %c0_i32_1 = arith.constant 0 : i32
    %c0_i32_2 = arith.constant 0 : i32
    return %c0_i32, %c0_i32_0, %c0_i32_1 : i32, i32, i32
  }
  func.func @transform_4(%arg0: i32) -> (i32, i32, i32) {
    %c0_i32 = arith.constant 0 : i32
    %c0_i32_0 = arith.constant 0 : i32
    %c0_i32_1 = arith.constant 0 : i32
    return %arg0, %c0_i32, %c0_i32_0 : i32, i32, i32
  }
}

</mosaic_0001>

<llo_original>
// kernel: encoder_forward.1
$region0: #{encoder_forward.1}
  #allocation0 [shape = 'u32[]', space=smem, size = 0x4, offset = 0x4, fixed_abs, tag = 'smem constant byte address 0x4 - core index']
  #allocation1 [shape = 'u32[144,128]{1,0:T(1,128)}', space=vmem, size = 0x12000, scoped, tag = 'internal scratch']
  %s0 = inlined_call_operand.vmem [shape: f32[2,4], index: 0, kind: input, shape index: {}]
  %s1 = inlined_call_operand.vmem [shape: bf16[2,18,32], index: 1, kind: input, shape index: {}]
  %s2 = inlined_call_operand.hbm [shape: f32[12,32,128], index: 2, kind: input, shape index: {}]
  %s3 = inlined_call_operand.vmem [shape: f32[4,1,128], index: 3, kind: input, shape index: {}]
  %s4 = inlined_call_operand.hbm [shape: f32[2,16,128], index: 4, kind: output, shape index: {}]
  %s5 = sld [smem:[#allocation0]]
  $region57: #{encoder_forward.1} parent=0
    _
  %s7 = ssub.s32 1, %s5
  %s8 = scalar_select 0, %s7, %s5
  $region1: #{encoder_forward.1} parent=0
    #allocation2 [shape = 'u8[1024]{0}', space=smem, size = 0x400, scoped, tag = 'input window, operand 0, single buffered']
    #allocation3 [shape = 's32[2]{0}', space=sflag, size = 0x8, scoped, tag = 'scoped memory for encoder_forward.1']
    #allocation4 [shape = 's32[2]{0}', space=sflag, size = 0x8, scoped, tag = 'scoped memory for encoder_forward.1']
    #allocation5 [shape = 's32[2]{0}', space=sflag, size = 0x8, scoped, tag = 'scoped memory for encoder_forward.1']
    #allocation6 [shape = 'u8[196608]{0}', space=vmem, size = 0x30000, scoped, tag = 'input window, operand 2, single buffered']
    #allocation7 [shape = 'u8[16384]{0}', space=vmem, size = 0x4000, scoped, tag = 'output window, operand 0']
    %9 = vsyncpa [#allocation5], 0
    %10 = vsyncpa [#allocation3], 0
    %11 = vsyncpa [#allocation4], 0
    %s12 = scalar_lea.sflag [#allocation4], 1
    %13 = vsyncpa %s12, 0
    loop: start=0, step=1, limit=4
    $region2: #{encoder_forward.1} parent=1 // loop_pre_header
      _
    $region3: #{encoder_forward.1} parent=1 // loop_header
      %s15 = sphi 0, %s19
      %p16 = scmp.ge.s32.totalorder %s15, 4
      %s23 = sphi 0, %s23
      %s25 = sphi 0, %s23
      %s26 = sphi 0, %s25
      %s40 = sphi 0, %s26
      %s46 = sphi 0, %s48
      %s49 = sphi 0, %s46
      %s50 = sphi 0, %s49
      %s66 = sphi 0, %s50
      %s70 = sphi 0, %s70
      %s72 = sphi 0, %s70
      %s73 = sphi 0, %s72
      %s87 = sphi 0, %s73
      %s91 = sphi 0, %s91
      %s93 = sphi 0, %s91
      %s94 = sphi 0, %s93
      %s108 = sphi 0, %s94
      %s114 = sphi 0, %s116
      %s117 = sphi 0, %s114
      %s118 = sphi 0, %s117
      %s134 = sphi 0, %s118
    $region4: #{encoder_forward.1} parent=1 // loop_header_branch
      %18 = sbr.rel (%p16) target = $region8
    $region5: #{encoder_forward.1} parent=1 // loop_body
      %s20 = ssub.s32 %s15, 1
      %s21 = ssub.s32 %s15, 2
      %s22 = sadd.s32 %s15, 1
      %s24 = sadd.s32 %s23, 1
      %p27 = scmp.eq.s32.totalorder %s15, 1
      %p28 = scmp.ne.s32.totalorder %s23, %s25
      %p29 = scmp.eq.s32.totalorder %s15, 0
      %p30 = por %p28, %p29
      %p31 = scmp.ne.s32.totalorder %s23, %s25
      %p32 = scmp.eq.s32.totalorder %s20, 1
      %p33 = por %p31, %p32
      %p34 = scmp.ne.s32.totalorder %s25, %s26
      %p35 = scmp.eq.s32.totalorder %s20, 0
      %p36 = por %p34, %p35
      %p37 = scmp.ne.s32.totalorder %s25, %s26
      %p38 = scmp.eq.s32.totalorder %s21, 1
      %p39 = por %p37, %p38
      %p41 = scmp.ne.s32.totalorder %s26, %s40
      %p42 = scmp.eq.s32.totalorder %s21, 0
      %p43 = por %p41, %p42
      %s44 = ssub.s32 %s15, %s22
      %p45 = scmp.eq.s32.totalorder %s44, 0
      %s47 = sadd.s32 %s46, 1
      %s48 = scalar_select %p45, %s46, %s47
      %p51 = pneg %p45
      %p52 = scmp.eq.s32.totalorder %s15, 1
      %p53 = por %p51, %p52
      %p54 = scmp.ne.s32.totalorder %s46, %s49
      %p55 = scmp.eq.s32.totalorder %s15, 0
      %p56 = por %p54, %p55
      %p57 = scmp.ne.s32.totalorder %s46, %s49
      %p58 = scmp.eq.s32.totalorder %s20, 1
      %p59 = por %p57, %p58
      %p60 = scmp.ne.s32.totalorder %s49, %s50
      %p61 = scmp.eq.s32.totalorder %s20, 0
      %p62 = por %p60, %p61
      %p63 = scmp.ne.s32.totalorder %s49, %s50
      %p64 = scmp.eq.s32.totalorder %s21, 1
      %p65 = por %p63, %p64
      %p67 = scmp.ne.s32.totalorder %s50, %s66
      %p68 = scmp.eq.s32.totalorder %s21, 0
      %p69 = por %p67, %p68
      %s71 = sadd.s32 %s70, 1
      %p74 = scmp.eq.s32.totalorder %s15, 1
      %p75 = scmp.ne.s32.totalorder %s70, %s72
      %p76 = scmp.eq.s32.totalorder %s15, 0
      %p77 = por %p75, %p76
      %p78 = scmp.ne.s32.totalorder %s70, %s72
      %p79 = scmp.eq.s32.totalorder %s20, 1
      %p80 = por %p78, %p79
      %p81 = scmp.ne.s32.totalorder %s72, %s73
      %p82 = scmp.eq.s32.totalorder %s20, 0
      %p83 = por %p81, %p82
      %p84 = scmp.ne.s32.totalorder %s72, %s73
      %p85 = scmp.eq.s32.totalorder %s21, 1
      %p86 = por %p84, %p85
      %p88 = scmp.ne.s32.totalorder %s73, %s87
      %p89 = scmp.eq.s32.totalorder %s21, 0
      %p90 = por %p88, %p89
      %s92 = sadd.s32 %s91, 1
      %p95 = scmp.eq.s32.totalorder %s15, 1
      %p96 = scmp.ne.s32.totalorder %s91, %s93
      %p97 = scmp.eq.s32.totalorder %s15, 0
      %p98 = por %p96, %p97
      %p99 = scmp.ne.s32.totalorder %s91, %s93
      %p100 = scmp.eq.s32.totalorder %s20, 1
      %p101 = por %p99, %p100
      %p102 = scmp.ne.s32.totalorder %s93, %s94
      %p103 = scmp.eq.s32.totalorder %s20, 0
      %p104 = por %p102, %p103
      %p105 = scmp.ne.s32.totalorder %s93, %s94
      %p106 = scmp.eq.s32.totalorder %s21, 1
      %p107 = por %p105, %p106
      %p109 = scmp.ne.s32.totalorder %s94, %s108
      %p110 = scmp.eq.s32.totalorder %s21, 0
      %p111 = por %p109, %p110
      %s112 = ssub.s32 %s15, %s22
      %p113 = scmp.eq.s32.totalorder %s112, 0
      %s115 = sadd.s32 %s114, 1
      %s116 = scalar_select %p113, %s114, %s115
      %p119 = pneg %p113
      %p120 = scmp.eq.s32.totalorder %s15, 1
      %p121 = por %p119, %p120
      %p122 = scmp.ne.s32.totalorder %s114, %s117
      %p123 = scmp.eq.s32.totalorder %s15, 0
      %p124 = por %p122, %p123
      %p125 = scmp.ne.s32.totalorder %s114, %s117
      %p126 = scmp.eq.s32.totalorder %s20, 1
      %p127 = por %p125, %p126
      %p128 = scmp.ne.s32.totalorder %s117, %s118
      %p129 = scmp.eq.s32.totalorder %s20, 0
      %p130 = por %p128, %p129
      %p131 = scmp.ne.s32.totalorder %s117, %s118
      %p132 = scmp.eq.s32.totalorder %s21, 1
      %p133 = por %p131, %p132
      %p135 = scmp.ne.s32.totalorder %s118, %s134
      %p136 = scmp.eq.s32.totalorder %s21, 0
      %p137 = por %p135, %p136
      %p138 = scmp.le.s32.totalorder 1, %s15
      %p139 = scmp.lt.s32.totalorder %s15, 3
      %p140 = pnand %p138, %p139
      %p141 = pneg %p140
      // Predicated region
      $region9: #{encoder_forward.1} parent=5 // pred_check
        _
      $region10: #{encoder_forward.1} parent=5 // pred_check_branch
        %143 = sbr.rel (%p140) target = $region12
      $region11: #{encoder_forward.1} parent=5 // pred_region
        %s144 = ssub.s32 %s15, 1
        // Predicated region
        $region13: #{encoder_forward.1} parent=11 // pred_check
          %p145 = pneg %p36
        $region14: #{encoder_forward.1} parent=11 // pred_check_branch
          %147 = sbr.rel (%p145) target = $region16
        $region15: #{encoder_forward.1} parent=11 // pred_region
          %s149 = ssub.s32 32, 32
          %150 = vsyncadd [#allocation5], %s149
          %s152 = sshll.u32 %s0, 4
          %s153 = int_to_ptr.vmem [resolvable:$true] %s152
          %155 = dma.vmem_to_smem %s153, 32, [#allocation2], [#allocation5]
        $region16: #{encoder_forward.1} parent=11 // pred_fallthru
          _
        // Predicated region
        $region17: #{encoder_forward.1} parent=11 // pred_check
          %p156 = pneg %p83
        $region18: #{encoder_forward.1} parent=11 // pred_check_branch
          %158 = sbr.rel (%p156) target = $region20
        $region19: #{encoder_forward.1} parent=11 // pred_region
          %s160 = ssub.s32 6144, 6144
          %161 = vsyncadd [#allocation3], %s160
          %s162 = sshll.u32 [#allocation6], 4
          %s163 = int_to_ptr.vmem [resolvable:$true] %s162
          %168 = dma.hbm_to_vmem [thread:$0]  %s2, 6144, %s163, [#allocation3], 128, 128, 8
        $region20: #{encoder_forward.1} parent=11 // pred_fallthru
          _
        // Predicated region
        $region21: #{encoder_forward.1} parent=11 // pred_check
          %p169 = pneg %p104
        $region22: #{encoder_forward.1} parent=11 // pred_check_branch
          %171 = sbr.rel (%p169) target = $region24
        $region23: #{encoder_forward.1} parent=11 // pred_region
          _
        $region24: #{encoder_forward.1} parent=11 // pred_fallthru
          _
      $region12: #{encoder_forward.1} parent=5 // pred_fallthru
        _
      %p172 = scmp.lt.s32.totalorder %s15, 2
      // Predicated region
      $region25: #{encoder_forward.1} parent=5 // pred_check
        %p173 = pneg %p172
      $region26: #{encoder_forward.1} parent=5 // pred_check_branch
        %175 = sbr.rel (%p173) target = $region28
      $region27: #{encoder_forward.1} parent=5 // pred_region
        // Predicated region
        $region29: #{encoder_forward.1} parent=27 // pred_check
          %p176 = pneg %p56
        $region30: #{encoder_forward.1} parent=27 // pred_check_branch
          %178 = sbr.rel (%p176) target = $region32
        $region31: #{encoder_forward.1} parent=27 // pred_region
          %p179 = scmp.lt.s32.totalorder %s15, 1
          %s180 = scalar_select %p179, %s15, 1
          %s181 = smul.addr %s180, 3
          %s182 = smul.addr %s181, 4
          %s183 = scalar_lea.vmem %s1, %s182
        $region32: #{encoder_forward.1} parent=27 // pred_fallthru
          _
      $region28: #{encoder_forward.1} parent=5 // pred_fallthru
        _
      %p184 = scmp.le.s32.totalorder 1, %s15
      %p185 = scmp.lt.s32.totalorder %s15, 3
      %p186 = pnand %p184, %p185
      %p187 = pneg %p186
      // Predicated region
      $region33: #{encoder_forward.1} parent=5 // pred_check
        _
      $region34: #{encoder_forward.1} parent=5 // pred_check_branch
        %189 = sbr.rel (%p186) target = $region36
      $region35: #{encoder_forward.1} parent=5 // pred_region
        %s190 = ssub.s32 %s15, 1
        // Predicated region
        $region37: #{encoder_forward.1} parent=35 // pred_check
          %p191 = pneg %p36
        $region38: #{encoder_forward.1} parent=35 // pred_check_branch
          %193 = sbr.rel (%p191) target = $region40
        $region39: #{encoder_forward.1} parent=35 // pred_region
          %194 = dma.done [#allocation5], 32
        $region40: #{encoder_forward.1} parent=35 // pred_fallthru
          _
        // Predicated region
        $region41: #{encoder_forward.1} parent=35 // pred_check
          %p195 = pneg %p83
        $region42: #{encoder_forward.1} parent=35 // pred_check_branch
          %197 = sbr.rel (%p195) target = $region44
        $region43: #{encoder_forward.1} parent=35 // pred_region
          %198 = dma.done [#allocation3], 6144
        $region44: #{encoder_forward.1} parent=35 // pred_fallthru
          _
        %199 = sfence
        %p200 = pneg %p36
        %p201 = pneg %p33
        %p202 = scmp.lt.s32.totalorder %s20, 1
        %s203 = scalar_select %p202, %s20, 1
        %s204 = smul.addr %s203, 3
        %s205 = smul.addr %s204, 4
        %s206 = scalar_lea.vmem %s1, %s205
        %p207 = pneg %p62
        %p208 = pneg %p59
        %p209 = pneg %p83
        %p210 = pneg %p80
        %p211 = pneg %p104
        %p212 = pneg %p101
        %p213 = pneg %p130
        %p214 = pneg %p127
        %s215 = sand.u32 %s117, 1
        %s216 = scalar_lea.sflag [#allocation4], %s215
        %s217 = sand.u32 %s117, 1
        %s218 = smul.addr %s217, 16
        %s219 = scalar_lea.vmem [#allocation7], %s218
        %p220 = scmp.lt.s32.totalorder %s20, 1
        %s221 = scalar_select %p220, %s20, 1
        %s222 = smul.addr %s221, 3
        %s223 = smul.addr %s222, 4
        %s224 = scalar_lea.vmem %s1, %s223
        %s226 = smul.u32 %s20, 128
        %s227 = sld [smem:[#allocation2 + %s226]]
        %s228 = sadd.s32 %s226, 1
        %s229 = sld [smem:[#allocation2 + %s228]]
        %s230 = sadd.s32 %s226, 2
        %s231 = sld [smem:[#allocation2 + %s230]]
        %s232 = sadd.s32 %s226, 3
        %s233 = sld [smem:[#allocation2 + %s232]]
        %v234 = vld [vmem:[%s3] sm:$0x1]
        %v235 = vstv %s227
        %v236 = vmul.f32 %v235, %v234
        %s237 = scalar_lea.vmem %s3, 1
        %v238 = vld [vmem:[%s237] sm:$0x1]
        %v239 = vstv %s229
        %v240 = vmul.f32 %v239, %v238
        %v241 = vadd.f32 %v236, %v240
        %s242 = scalar_lea.vmem %s3, 2
        %v243 = vld [vmem:[%s242] sm:$0x1]
        %v244 = vstv %s231
        %v245 = vmul.f32 %v244, %v243
        %v246 = vadd.f32 %v241, %v245
        %s247 = scalar_lea.vmem %s3, 3
        %v248 = vld [vmem:[%s247] sm:$0x1]
        %v249 = vstv %s233
        %v250 = vmul.f32 %v249, %v248
        %v251 = vadd.f32 %v246, %v250
        %v252 = vld [vmem:[#allocation6] sm:$0xff]
        %v253 = vld [vmem:[#allocation6 + $0x8] sm:$0xff]
        %v254 = vld [vmem:[#allocation6 + $0x10] sm:$0xff]
        %v255 = vld [vmem:[#allocation6 + $0x18] sm:$0xff]
        %v256 = vmul.f32 %v235, %v252
        %v257 = vmul.f32 %v235, %v253
        %v258 = vmul.f32 %v235, %v254
        %v259 = vmul.f32 %v235, %v255
        %s260 = scalar_lea.vmem [#allocation6], 96
        %v261 = vld [vmem:[%s260] sm:$0xff]
        %v262 = vld [vmem:[%s260 + $0x8] sm:$0xff]
        %v263 = vld [vmem:[%s260 + $0x10] sm:$0xff]
        %v264 = vld [vmem:[%s260 + $0x18] sm:$0xff]
        %v265 = vmul.f32 %v239, %v261
        %v266 = vmul.f32 %v239, %v262
        %v267 = vmul.f32 %v239, %v263
        %v268 = vmul.f32 %v239, %v264
        %v269 = vadd.f32 %v256, %v265
        %v270 = vadd.f32 %v257, %v266
        %v271 = vadd.f32 %v258, %v267
        %v272 = vadd.f32 %v259, %v268
        %s273 = scalar_lea.vmem [#allocation6], 192
        %v274 = vld [vmem:[%s273] sm:$0xff]
        %v275 = vld [vmem:[%s273 + $0x8] sm:$0xff]
        %v276 = vld [vmem:[%s273 + $0x10] sm:$0xff]
        %v277 = vld [vmem:[%s273 + $0x18] sm:$0xff]
        %v278 = vmul.f32 %v244, %v274
        %v279 = vmul.f32 %v244, %v275
        %v280 = vmul.f32 %v244, %v276
        %v281 = vmul.f32 %v244, %v277
        %v282 = vadd.f32 %v269, %v278
        %v283 = vadd.f32 %v270, %v279
        %v284 = vadd.f32 %v271, %v280
        %v285 = vadd.f32 %v272, %v281
        %s286 = scalar_lea.vmem [#allocation6], 288
        %v287 = vld [vmem:[%s286] sm:$0xff]
        %v288 = vld [vmem:[%s286 + $0x8] sm:$0xff]
        %v289 = vld [vmem:[%s286 + $0x10] sm:$0xff]
        %v290 = vld [vmem:[%s286 + $0x18] sm:$0xff]
        %v291 = vmul.f32 %v249, %v287
        %v292 = vmul.f32 %v249, %v288
        %v293 = vmul.f32 %v249, %v289
        %v294 = vmul.f32 %v249, %v290
        %v295 = vadd.f32 %v282, %v291
        %v296 = vadd.f32 %v283, %v292
        %v297 = vadd.f32 %v284, %v293
        %v298 = vadd.f32 %v285, %v294
        %v299 = vld [vmem:[%s224] sm:$0xf]
        %v300 = vld [vmem:[%s224 + $0x4] sm:$0xf]
        %v301 = vpack.c.bf16 %v296, %v295
        %v302 = vpack.c.bf16 %v298, %v297
        %s303 = scalar_lea.vmem [#allocation6], 32
        %v304 = vld [vmem:[%s303] sm:$0xff]
        %v305 = vld [vmem:[%s303 + $0x8] sm:$0xff]
        %v306 = vld [vmem:[%s303 + $0x10] sm:$0xff]
        %v307 = vld [vmem:[%s303 + $0x18] sm:$0xff]
        %v308 = vmul.f32 %v235, %v304
        %v309 = vmul.f32 %v235, %v305
        %v310 = vmul.f32 %v235, %v306
        %v311 = vmul.f32 %v235, %v307
        %s312 = scalar_lea.vmem [#allocation6], 128
        %v313 = vld [vmem:[%s312] sm:$0xff]
        %v314 = vld [vmem:[%s312 + $0x8] sm:$0xff]
        %v315 = vld [vmem:[%s312 + $0x10] sm:$0xff]
        %v316 = vld [vmem:[%s312 + $0x18] sm:$0xff]
        %v317 = vmul.f32 %v239, %v313
        %v318 = vmul.f32 %v239, %v314
        %v319 = vmul.f32 %v239, %v315
        %v320 = vmul.f32 %v239, %v316
        %v321 = vadd.f32 %v308, %v317
        %v322 = vadd.f32 %v309, %v318
        %v323 = vadd.f32 %v310, %v319
        %v324 = vadd.f32 %v311, %v320
        %s325 = scalar_lea.vmem [#allocation6], 224
        %v326 = vld [vmem:[%s325] sm:$0xff]
        %v327 = vld [vmem:[%s325 + $0x8] sm:$0xff]
        %v328 = vld [vmem:[%s325 + $0x10] sm:$0xff]
        %v329 = vld [vmem:[%s325 + $0x18] sm:$0xff]
        %v330 = vmul.f32 %v244, %v326
        %v331 = vmul.f32 %v244, %v327
        %v332 = vmul.f32 %v244, %v328
        %v333 = vmul.f32 %v244, %v329
        %v334 = vadd.f32 %v321, %v330
        %v335 = vadd.f32 %v322, %v331
        %v336 = vadd.f32 %v323, %v332
        %v337 = vadd.f32 %v324, %v333
        %s338 = scalar_lea.vmem [#allocation6], 320
        %v339 = vld [vmem:[%s338] sm:$0xff]
        %v340 = vld [vmem:[%s338 + $0x8] sm:$0xff]
        %v341 = vld [vmem:[%s338 + $0x10] sm:$0xff]
        %v342 = vld [vmem:[%s338 + $0x18] sm:$0xff]
        %v343 = vmul.f32 %v249, %v339
        %v344 = vmul.f32 %v249, %v340
        %v345 = vmul.f32 %v249, %v341
        %v346 = vmul.f32 %v249, %v342
        %v347 = vadd.f32 %v334, %v343
        %v348 = vadd.f32 %v335, %v344
        %v349 = vadd.f32 %v336, %v345
        %v350 = vadd.f32 %v337, %v346
        %v351 = vld [vmem:[%s224 + $0x8] sm:$0x1]
        %v352 = vpack.c.bf16 %v348, %v347
        %v353 = vpack.c.bf16 %v350, %v349
        %v357 = vunpack.c.l.b16 %v299
        %v358 = vunpack.c.l.b16 %v300
        %v359 = vunpack.c.l.b16 %v351
        %v360 = vpack.c.b16 %v358, %v357
        %v361 = vpack.c.b16 %v359, %v359
        %vm362 = vsmask.f32 7424
        %v364 = vshrl.u32 %v360, 16
        %v366 = vshll.u32 %v360, 16
        %v368 = vrot.slane %v366, 1
        %v369 = vor.u32 %v364, %v368
        %v371 = vshll.u32 %v361, 16
        %v373 = vrot.slane %v371, 1
        %v374 = vsel %vm362, %v369, %v373
        %vm375 = vcmask 261120
        %v377 = vsel %vm375, %v374, 0
        %379 = vmatprep.subr.bf16.mxu0 0
        %380 = vmatpush1.bf16.msra.mxu0 %v352
        %381 = vmatprep.subr.bf16.mxu0 0
        %382 = vmatpush1.bf16.msra.mxu0 %v353
        %383 = vmatprep.subr.bf16.mxu0 0
        %384 = vmatpush1.bf16.msra.mxu0 0
        %385 = vmatprep.subr.bf16.mxu0 0
        %386 = vmatpush1.bf16.msra.mxu0 0
        %387 = vmatprep.subr.bf16.mxu0 0
        %388 = vmatpush1.bf16.msra.mxu0 0
        %389 = vmatprep.subr.bf16.mxu0 0
        %390 = vmatpush1.bf16.msra.mxu0 0
        %391 = vmatprep.subr.bf16.mxu0 0
        %392 = vmatpush1.bf16.msra.mxu0 0
        %393 = vmatprep.subr.bf16.mxu0 0
        %394 = vmatpush1.bf16.msra.mxu0 0
        %395 = vmatprep.subr.bf16.mxu0 0
        %396 = vmatpush1.bf16.msra.mxu0 0
        %397 = vmatprep.subr.bf16.mxu0 0
        %398 = vmatpush1.bf16.msra.mxu0 0
        %399 = vmatprep.subr.bf16.mxu0 0
        %400 = vmatpush1.bf16.msra.mxu0 0
        %401 = vmatprep.subr.bf16.mxu0 0
        %402 = vmatpush1.bf16.msra.mxu0 0
        %403 = vmatprep.subr.bf16.mxu0 0
        %404 = vmatpush1.bf16.msra.mxu0 0
        %405 = vmatprep.subr.bf16.mxu0 0
        %406 = vmatpush1.bf16.msra.mxu0 0
        %407 = vmatprep.subr.bf16.mxu0 0
        %408 = vmatpush1.bf16.msra.mxu0 0
        %409 = vmatprep.subr.bf16.mxu0 0
        %410 = vmatpush1.bf16.msra.mxu0 0
        %411 = vmatprep.mubr.bf16.mxu0 0
        %412 = vmatmul.mubr.bf16.gmra.mrb[0].mxu0 %v377
        %v413 = vpop.f32.mrb[0].mxu0
        %v414 = vadd.f32 0.0, %v413
        %v415 = vpop.f32.mrb[0].mxu0
        %v416 = vpop.f32.mrb[0].mxu0
        %v417 = vadd.f32 0.0, %v416
        %v418 = vpop.f32.mrb[0].mxu0
        %419 = vdwg.mxu0
        %v420 = vsel %vm375, %v360, 0
        %422 = vmatprep.subr.bf16.mxu0 0
        %423 = vmatpush1.bf16.msra.mxu0 %v301
        %424 = vmatprep.subr.bf16.mxu0 0
        %425 = vmatpush1.bf16.msra.mxu0 %v302
        %426 = vmatprep.subr.bf16.mxu0 0
        %427 = vmatpush1.bf16.msra.mxu0 0
        %428 = vmatprep.subr.bf16.mxu0 0
        %429 = vmatpush1.bf16.msra.mxu0 0
        %430 = vmatprep.subr.bf16.mxu0 0
        %431 = vmatpush1.bf16.msra.mxu0 0
        %432 = vmatprep.subr.bf16.mxu0 0
        %433 = vmatpush1.bf16.msra.mxu0 0
        %434 = vmatprep.subr.bf16.mxu0 0
        %435 = vmatpush1.bf16.msra.mxu0 0
        %436 = vmatprep.subr.bf16.mxu0 0
        %437 = vmatpush1.bf16.msra.mxu0 0
        %438 = vmatprep.subr.bf16.mxu0 0
        %439 = vmatpush1.bf16.msra.mxu0 0
        %440 = vmatprep.subr.bf16.mxu0 0
        %441 = vmatpush1.bf16.msra.mxu0 0
        %442 = vmatprep.subr.bf16.mxu0 0
        %443 = vmatpush1.bf16.msra.mxu0 0
        %444 = vmatprep.subr.bf16.mxu0 0
        %445 = vmatpush1.bf16.msra.mxu0 0
        %446 = vmatprep.subr.bf16.mxu0 0
        %447 = vmatpush1.bf16.msra.mxu0 0
        %448 = vmatprep.subr.bf16.mxu0 0
        %449 = vmatpush1.bf16.msra.mxu0 0
        %450 = vmatprep.subr.bf16.mxu0 0
        %451 = vmatpush1.bf16.msra.mxu0 0
        %452 = vmatprep.subr.bf16.mxu0 0
        %453 = vmatpush1.bf16.msra.mxu0 0
        %454 = vmatprep.mubr.bf16.mxu0 0
        %455 = vmatmul.mubr.bf16.gmra.mrb[0].mxu0 %v420
        %v456 = vpop.f32.mrb[0].mxu0
        %v457 = vadd.f32 %v414, %v456
        %v458 = vpop.f32.mrb[0].mxu0
        %v459 = vpop.f32.mrb[0].mxu0
        %v460 = vadd.f32 %v417, %v459
        %v461 = vpop.f32.mrb[0].mxu0
        %462 = vdwg.mxu0
        %s463 = scalar_lea.vmem [#allocation6], 64
        %v464 = vld [vmem:[%s463] sm:$0xff]
        %v465 = vld [vmem:[%s463 + $0x8] sm:$0xff]
        %v466 = vld [vmem:[%s463 + $0x10] sm:$0xff]
        %v467 = vld [vmem:[%s463 + $0x18] sm:$0xff]
        %v468 = vmul.f32 %v235, %v464
        %v469 = vmul.f32 %v235, %v465
        %v470 = vmul.f32 %v235, %v466
        %v471 = vmul.f32 %v235, %v467
        %s472 = scalar_lea.vmem [#allocation6], 160
        %v473 = vld [vmem:[%s472] sm:$0xff]
        %v474 = vld [vmem:[%s472 + $0x8] sm:$0xff]
        %v475 = vld [vmem:[%s472 + $0x10] sm:$0xff]
        %v476 = vld [vmem:[%s472 + $0x18] sm:$0xff]
        %v477 = vmul.f32 %v239, %v473
        %v478 = vmul.f32 %v239, %v474
        %v479 = vmul.f32 %v239, %v475
        %v480 = vmul.f32 %v239, %v476
        %v481 = vadd.f32 %v468, %v477
        %v482 = vadd.f32 %v469, %v478
        %v483 = vadd.f32 %v470, %v479
        %v484 = vadd.f32 %v471, %v480
        %s485 = scalar_lea.vmem [#allocation6], 256
        %v486 = vld [vmem:[%s485] sm:$0xff]
        %v487 = vld [vmem:[%s485 + $0x8] sm:$0xff]
        %v488 = vld [vmem:[%s485 + $0x10] sm:$0xff]
        %v489 = vld [vmem:[%s485 + $0x18] sm:$0xff]
        %v490 = vmul.f32 %v244, %v486
        %v491 = vmul.f32 %v244, %v487
        %v492 = vmul.f32 %v244, %v488
        %v493 = vmul.f32 %v244, %v489
        %v494 = vadd.f32 %v481, %v490
        %v495 = vadd.f32 %v482, %v491
        %v496 = vadd.f32 %v483, %v492
        %v497 = vadd.f32 %v484, %v493
        %s498 = scalar_lea.vmem [#allocation6], 352
        %v499 = vld [vmem:[%s498] sm:$0xff]
        %v500 = vld [vmem:[%s498 + $0x8] sm:$0xff]
        %v501 = vld [vmem:[%s498 + $0x10] sm:$0xff]
        %v502 = vld [vmem:[%s498 + $0x18] sm:$0xff]
        %v503 = vmul.f32 %v249, %v499
        %v504 = vmul.f32 %v249, %v500
        %v505 = vmul.f32 %v249, %v501
        %v506 = vmul.f32 %v249, %v502
        %v507 = vadd.f32 %v494, %v503
        %v508 = vadd.f32 %v495, %v504
        %v509 = vadd.f32 %v496, %v505
        %v510 = vadd.f32 %v497, %v506
        %v511 = vld [vmem:[%s224] sm:$0xe]
        %v512 = vpack.c.bf16 %v508, %v507
        %v513 = vpack.c.bf16 %v510, %v509
        %v515 = vunpack.c.l.b16 %v511
        %v516 = vpack.c.b16 %v358, %v515
        %vm517 = vcmask 1046528
        %v518 = vrot.slane %v516, 1
        %v519 = vrot.slane %v361, 1
        %v520 = vsel %vm517, %v518, %v519
        %v522 = vsel %vm375, %v520, 0
        %524 = vmatprep.subr.bf16.mxu0 0
        %525 = vmatpush1.bf16.msra.mxu0 %v512
        %526 = vmatprep.subr.bf16.mxu0 0
        %527 = vmatpush1.bf16.msra.mxu0 %v513
        %528 = vmatprep.subr.bf16.mxu0 0
        %529 = vmatpush1.bf16.msra.mxu0 0
        %530 = vmatprep.subr.bf16.mxu0 0
        %531 = vmatpush1.bf16.msra.mxu0 0
        %532 = vmatprep.subr.bf16.mxu0 0
        %533 = vmatpush1.bf16.msra.mxu0 0
        %534 = vmatprep.subr.bf16.mxu0 0
        %535 = vmatpush1.bf16.msra.mxu0 0
        %536 = vmatprep.subr.bf16.mxu0 0
        %537 = vmatpush1.bf16.msra.mxu0 0
        %538 = vmatprep.subr.bf16.mxu0 0
        %539 = vmatpush1.bf16.msra.mxu0 0
        %540 = vmatprep.subr.bf16.mxu0 0
        %541 = vmatpush1.bf16.msra.mxu0 0
        %542 = vmatprep.subr.bf16.mxu0 0
        %543 = vmatpush1.bf16.msra.mxu0 0
        %544 = vmatprep.subr.bf16.mxu0 0
        %545 = vmatpush1.bf16.msra.mxu0 0
        %546 = vmatprep.subr.bf16.mxu0 0
        %547 = vmatpush1.bf16.msra.mxu0 0
        %548 = vmatprep.subr.bf16.mxu0 0
        %549 = vmatpush1.bf16.msra.mxu0 0
        %550 = vmatprep.subr.bf16.mxu0 0
        %551 = vmatpush1.bf16.msra.mxu0 0
        %552 = vmatprep.subr.bf16.mxu0 0
        %553 = vmatpush1.bf16.msra.mxu0 0
        %554 = vmatprep.subr.bf16.mxu0 0
        %555 = vmatpush1.bf16.msra.mxu0 0
        %556 = vmatprep.mubr.bf16.mxu0 0
        %557 = vmatmul.mubr.bf16.gmra.mrb[0].mxu0 %v522
        %v558 = vpop.f32.mrb[0].mxu0
        %v559 = vadd.f32 0.0, %v558
        %v560 = vpop.f32.mrb[0].mxu0
        %v561 = vpop.f32.mrb[0].mxu0
        %v562 = vadd.f32 0.0, %v561
        %v563 = vpop.f32.mrb[0].mxu0
        %564 = vdwg.mxu0
        %v565 = vadd.f32 %v457, %v559
        %v566 = vadd.f32 %v460, %v562
        %v568 = vlaneseq
        %v569 = vshrl.u32 %v568, 7
        %v570 = vsub.s32 0, %v569
        %v571 = vrot.slane %v251, %v570
        %v573 = vadd.f32 %v565, %v571
        %v574 = vadd.f32 %v566, %v571
        %575 = vst [vmem:[%s219] sm:$0xff] %v573
        %576 = vst [vmem:[%s219 + $0x8] sm:$0xff] %v574
        %s577 = sand.u32 %s117, 1
        %s578 = scalar_lea.sflag [#allocation4], %s577
        %s579 = sand.u32 %s117, 1
        %s580 = smul.addr %s579, 16
        %s581 = scalar_lea.vmem [#allocation7], %s580
        // Predicated region
        $region45: #{encoder_forward.1} parent=35 // pred_check
          %p582 = pneg %p127
        $region46: #{encoder_forward.1} parent=35 // pred_check_branch
          %584 = sbr.rel (%p582) target = $region48
        $region47: #{encoder_forward.1} parent=35 // pred_region
          %s586 = ssub.s32 256, 256
          %587 = vsyncadd %s578, %s586
          %s588 = smul.addr %s20, 2
          %s589 = smul.addr %s588, 128
          %s590 = scalar_lea.hbm %s4, %s589
          %s591 = sshll.u32 %s581, 4
          %s592 = int_to_ptr.vmem [resolvable:$true] %s591
          %597 = dma.vmem_to_hbm [thread:$0]  %s592, 256, %s590, %s578, 128, 128, 8
        $region48: #{encoder_forward.1} parent=35 // pred_fallthru
          _
      $region36: #{encoder_forward.1} parent=5 // pred_fallthru
        _
      %p598 = scmp.le.s32.totalorder 2, %s15
      // Predicated region
      $region49: #{encoder_forward.1} parent=5 // pred_check
        %p599 = pneg %p598
      $region50: #{encoder_forward.1} parent=5 // pred_check_branch
        %601 = sbr.rel (%p599) target = $region52
      $region51: #{encoder_forward.1} parent=5 // pred_region
        %s602 = ssub.s32 %s15, 2
        // Predicated region
        $region53: #{encoder_forward.1} parent=51 // pred_check
          %p603 = pneg %p133
        $region54: #{encoder_forward.1} parent=51 // pred_check_branch
          %605 = sbr.rel (%p603) target = $region56
        $region55: #{encoder_forward.1} parent=51 // pred_region
          %s606 = sand.u32 %s118, 1
          %s607 = scalar_lea.sflag [#allocation4], %s606
          %s608 = sand.u32 %s118, 1
          %s609 = smul.addr %s608, 16
          %s610 = scalar_lea.vmem [#allocation7], %s609
          %611 = dma.done %s607, 256
        $region56: #{encoder_forward.1} parent=51 // pred_fallthru
          _
      $region52: #{encoder_forward.1} parent=5 // pred_fallthru
        _
    $region6: #{encoder_forward.1} parent=1 // loop_footer
      %s19 = sadd.s32 1, %s15
    $region7: #{encoder_forward.1} parent=1 // loop_footer_branch
      %14 = sbr.rel target = $region3
    $region8: #{encoder_forward.1} parent=1 // loop_exit
      _
    %612 = vsyncpa [#allocation3], 1
    %s613 = scalar_lea.sflag [#allocation3], 1
    %614 = vsyncpa %s613, 1
    %615 = vsyncpa [#allocation4], 1
    %s616 = scalar_lea.sflag [#allocation4], 1
    %617 = vsyncpa %s616, 1
    %618 = vsyncpa [#allocation5], 1
    %s619 = scalar_lea.sflag [#allocation5], 1
    %620 = vsyncpa %s619, 1

</llo_original>
